<compile_context>
chip_gen: v7x
topology: tpu7x:2x2x1
jax: 0.10.0
libtpu: 0.0.40
codegen_flags: <defaults>
</compile_context>

<pallas_src>
import math
from functools import partial

import jax
import jax.numpy as jnp
from jax.experimental import pallas as pl
from jax.experimental.pallas import tpu as pltpu


def _cdiv(a, b):
    return -(-a // b)


def _round_up(a, b):
    return _cdiv(a, b) * b


def _scoped_vmem_limit():
    """Generation-aware scoped-VMEM ceiling (v7x: 64 MiB/TC, v5e/v6e: 128 MiB)."""
    cap = 64 << 20  # conservative default: safe on every generation
    try:
        info = pltpu.get_tpu_info()
        c = int(getattr(info, "vmem_capacity_bytes", 0) or 0)
        if c > 0:
            cap = c
    except Exception:
        pass
    return int(min(cap * 3 // 4, 96 << 20))


# ---------------------------------------------------------------------------
# Fused (Kronecker) path: out[BN, M_pad] = x_flat[BN, K] @ W[K, M_pad]
# ---------------------------------------------------------------------------
def _fused_kernel(x_ref, w_ref, o_ref):
    # One MXU GEMM per grid step, f32 accumulation, lane-dense unmasked store.
    o_ref[...] = jnp.dot(
        x_ref[...], w_ref[...], preferred_element_type=jnp.float32
    ).astype(o_ref.dtype)


def _sepnet_fused(x_flat, w_pad, out_dtype, vmem_limit):
    BN, K = x_flat.shape
    _, M_pad = w_pad.shape
    x_isz = x_flat.dtype.itemsize
    w_isz = w_pad.dtype.itemsize
    o_isz = jnp.dtype(out_dtype).itemsize

    # Column tile: multiple of 128 that divides M_pad (keeps stores unmasked).
    if M_pad <= 512:
        TM = M_pad
    else:
        TM = 128
        for cand in (512, 384, 256):
            if M_pad % cand == 0:
                TM = cand
                break

    # Row tile: as large as the VMEM budget allows (fewer grid steps, big DMAs).
    w_buf = 2 * K * TM * w_isz                          # double-buffered W tile
    budget = max(vmem_limit - w_buf - (6 << 20), 4 << 20)
    tbn = budget // (2 * (K * x_isz + TM * o_isz))      # double-buffered x + out
    tbn = max(8, min(int(tbn) // 8 * 8, 8192))
    if BN >= 16:
        # keep >=2 row steps so dual-TensorCore chips get work on the i axis
        tbn = min(tbn, _round_up(_cdiv(BN, 2), 8))
    if BN < tbn:
        tbn = BN                                        # block == full short axis

    grid = (_cdiv(BN, tbn), M_pad // TM)
    flops = 2 * BN * K * M_pad
    bytes_accessed = x_isz * BN * K + w_isz * K * M_pad + o_isz * BN * M_pad

    return pl.pallas_call(
        _fused_kernel,
        out_shape=jax.ShapeDtypeStruct((BN, M_pad), out_dtype),
        grid_spec=pltpu.PrefetchScalarGridSpec(
            num_scalar_prefetch=0,
            grid=grid,
            in_specs=[
                pl.BlockSpec((tbn, K), lambda i, j: (i, 0)),
                pl.BlockSpec((K, TM), lambda i, j: (0, j)),
            ],
            out_specs=pl.BlockSpec((tbn, TM), lambda i, j: (i, j)),
        ),
        compiler_params=pltpu.CompilerParams(
            dimension_semantics=("parallel", "parallel"),
            vmem_limit_bytes=vmem_limit,
        ),
        cost_estimate=pl.CostEstimate(
            flops=flops, transcendentals=0, bytes_accessed=bytes_accessed
        ),
    )(x_flat, w_pad)


# ---------------------------------------------------------------------------
# Fallback path: two-stage GEMMs, wide stage-1, lane-dense padded output.
# ---------------------------------------------------------------------------
def _make_two_stage_kernel(TB, P):
    def kernel(x_ref, at_ref, bt_ref, o_ref):
        # x_ref: (TB, P, C); at_ref: (C, A_Wp) = A^T lane-padded;
        # bt_ref: (B_H, P) = B^T; o_ref: (TB, B_H, A_Wp).
        C = x_ref.shape[-1]
        bt = bt_ref[...]
        s2_dtype = bt.dtype
        if P % 8 == 0:
            # Stage 1: ONE wide GEMM over the whole row tile (fills MXU rows).
            t1_all = jnp.dot(
                x_ref[...].reshape(TB * P, C), at_ref[...],
                preferred_element_type=jnp.float32)
            if s2_dtype != jnp.float32:
                t1_all = t1_all.astype(s2_dtype)
            for t in range(TB):                          # static unroll, TB small
                o_ref[t] = jnp.dot(
                    bt, t1_all[t * P:(t + 1) * P, :],
                    preferred_element_type=jnp.float32).astype(o_ref.dtype)
        else:
            # Odd P: avoid a sublane-misaligned reshape; per-slice stage 1.
            for t in range(TB):
                t1 = jnp.dot(x_ref[t], at_ref[...],
                             preferred_element_type=jnp.float32)
                if s2_dtype != jnp.float32:
                    t1 = t1.astype(s2_dtype)
                o_ref[t] = jnp.dot(
                    bt, t1, preferred_element_type=jnp.float32).astype(o_ref.dtype)
    return kernel


def _sepnet_two_stage(x3, at_pad, bt, out_dtype, vmem_limit):
    BN, P, C = x3.shape
    B_H = bt.shape[0]
    A_Wp = at_pad.shape[1]
    x_isz = x3.dtype.itemsize
    o_isz = jnp.dtype(out_dtype).itemsize

    per_slice = P * C * x_isz + B_H * A_Wp * o_isz       # double-buffered in+out
    t1_slice = P * A_Wp * 4                              # f32 stage-1 intermediate
    budget = max(vmem_limit - (6 << 20), 4 << 20)
    tb = budget // (2 * per_slice + t1_slice)
    tb = max(8, min(int(tb) // 8 * 8, 32))               # 32: stage-2 loop unrolled
    if BN >= 16:
        tb = min(tb, _round_up(_cdiv(BN, 2), 8))
    if BN < tb:
        tb = BN

    grid = (_cdiv(BN, tb),)
    flops = 2 * BN * (P * C * A_Wp + B_H * P * A_Wp)
    bytes_accessed = (x_isz * BN * P * C + o_isz * BN * B_H * A_Wp
                      + x_isz * (C * A_Wp + B_H * P))

    return pl.pallas_call(
        _make_two_stage_kernel(tb, P),
        out_shape=jax.ShapeDtypeStruct((BN, B_H, A_Wp), out_dtype),
        grid_spec=pltpu.PrefetchScalarGridSpec(
            num_scalar_prefetch=0,
            grid=grid,
            in_specs=[
                pl.BlockSpec((tb, P, C), lambda i: (i, 0, 0)),
                pl.BlockSpec((C, A_Wp), lambda i: (0, 0)),
                pl.BlockSpec((B_H, P), lambda i: (0, 0)),
            ],
            out_specs=pl.BlockSpec((tb, B_H, A_Wp), lambda i: (i, 0, 0)),
        ),
        compiler_params=pltpu.CompilerParams(
            dimension_semantics=("parallel",),
            vmem_limit_bytes=vmem_limit,
        ),
        cost_estimate=pl.CostEstimate(
            flops=flops, transcendentals=0, bytes_accessed=bytes_accessed
        ),
    )(x3, at_pad, bt)


# ---------------------------------------------------------------------------
# Public wrapper
# ---------------------------------------------------------------------------
@partial(jax.jit, static_argnames=("force_path", "compute_dtype"))
def sepnet_linear_vit(x, A_ref, B_ref, force_path=None, compute_dtype=None):
    """x: [B, N, P, C]; A_ref: (A_W, A_H=C); B_ref: (B_W=P, B_H) -> [B, N, B_H, A_W].

    compute_dtype: optional narrower dtype (e.g. jnp.bfloat16) used at the HBM
    boundary for x and the weights; MXU accumulation stays f32.  Default keeps
    the input dtype so results match the f32 PyTorch module.
    """
    Bsz, N, P, C = x.shape
    A_W, A_H = A_ref.shape
    B_W, B_H = B_ref.shape
    assert A_H == C, "A_H must equal input_channels"
    assert B_W == P, "B_W must equal input_height*input_width"

    BN = Bsz * N
    K = P * C
    M = B_H * A_W
    M_pad = _round_up(M, 128)
    out_dtype = x.dtype
    cdtype = jnp.dtype(compute_dtype) if compute_dtype is not None else jnp.dtype(x.dtype)
    c_isz = cdtype.itemsize
    vmem_limit = _scoped_vmem_limit()

    if force_path is None:
        # Roofline test: the fused Kronecker GEMM is only "free" while it stays
        # HBM-bound (arith. intensity below ~240 FLOP/B, the v5e compute-bound
        # threshold — conservative for v6e/v7x) and W stays VMEM-small.
        ai_fused = (2.0 * K * M) / ((K + M_pad) * c_isz)
        use_fused = (ai_fused <= 240.0) and (K * M_pad * c_isz <= (8 << 20))
    else:
        use_fused = (force_path == "fused")

    if use_fused:
        # Kronecker operator  W[p*C + c, j*A_W + i] = B_ref[p, j] * A_ref[i, c]
        w = jnp.einsum("pj,ic->pcji", B_ref, A_ref).reshape(K, M).astype(cdtype)
        if M_pad != M:
            w = jnp.pad(w, ((0, 0), (0, M_pad - M)))        # pads weights only (tiny)
        x_flat = x.reshape(BN, K).astype(cdtype)            # free reshape; cast only if requested
        # K left un-padded: masked lane loads when K % 128 != 0, cheaper than an
        # extra HBM copy of the activation.
        out_flat = _sepnet_fused(x_flat, w, out_dtype, vmem_limit)
        if M_pad != M:
            out_flat = out_flat[:, :M]
        return out_flat.reshape(Bsz, N, B_H, A_W)

    # Fallback: (x @ A^T) then B^T @ (.), lane-dense (padded A_W) output.
    A_Wp = _round_up(A_W, 128)
    at = A_ref.T.astype(cdtype)                             # (C, A_W), pre-transposed in XLA
    if A_Wp != A_W:
        at = jnp.pad(at, ((0, 0), (0, A_Wp - A_W)))
    bt = B_ref.T.astype(cdtype)                             # (B_H, P)
    x3 = x.reshape(BN, P, C).astype(cdtype)
    out3 = _sepnet_two_stage(x3, at, bt, out_dtype, vmem_limit)
    if A_Wp != A_W:
        out3 = out3[:, :, :A_W]
    return out3.reshape(Bsz, N, B_H, A_W)


def kaiming_uniform_2d(key, shape, a=math.sqrt(5), dtype=jnp.float32):
    # Matches torch.nn.init.kaiming_uniform_ on a 2-D tensor.
    fan_in = shape[1]
    gain = math.sqrt(2.0 / (1.0 + a * a))
    bound = gain * math.sqrt(3.0 / fan_in)
    return jax.random.uniform(key, shape, dtype=dtype, minval=-bound, maxval=bound)


def _reference(x, A_ref, B_ref):
    return jnp.einsum("pj,bnpc,ic->bnji", B_ref, x, A_ref,
                      precision=jax.lax.Precision.HIGHEST)


if __name__ == "__main__":
    key = jax.random.PRNGKey(0)

    configs = [
        # (Bsz, N, P, C, A_W, B_H)   x = [Batch, patch_number+1, H*W, C]
        (2, 5, 16, 8, 12, 10),   # single-step grid, aligned P, aligned K=128
        (3, 7, 12, 5, 9, 11),    # ragged BN grid, K % 128 != 0, odd P
    ]

    ok = True
    for (Bsz, N, P, C, A_W, B_H) in configs:
        k_x, k_a, k_b, key = jax.random.split(key, 4)
        x = jax.random.normal(k_x, (Bsz, N, P, C), dtype=jnp.float32)
        A_ref = kaiming_uniform_2d(k_a, (A_W, C))
        B_ref = kaiming_uniform_2d(k_b, (P, B_H))

        ref = _reference(x, A_ref, B_ref)

        out_auto = jax.block_until_ready(sepnet_linear_vit(x, A_ref, B_ref))
        out_fused = jax.block_until_ready(
            sepnet_linear_vit(x, A_ref, B_ref, force_path="fused"))
        out_two = jax.block_until_ready(
            sepnet_linear_vit(x, A_ref, B_ref, force_path="two_stage"))
        out_bf16 = jax.block_until_ready(
            sepnet_linear_vit(x, A_ref, B_ref, compute_dtype=jnp.bfloat16))

        assert out_auto.shape == (Bsz, N, B_H, A_W)
        ok &= bool(jnp.allclose(out_auto, ref, atol=1e-4, rtol=1e-4))
        ok &= bool(jnp.allclose(out_fused, ref, atol=1e-4, rtol=1e-4))
        ok &= bool(jnp.allclose(out_two, ref, atol=1e-4, rtol=1e-4))
        # bf16 HBM-boundary cast keeps f32 accumulation but loses input mantissa:
        # looser tolerance per the correctness note.
        ok &= bool(jnp.allclose(out_bf16, ref, atol=8e-2, rtol=8e-2))

    if ok:
        print("KERNEL_OK")
    else:
        raise SystemExit("mismatch vs reference")
</pallas_src>

<mosaic_0001>
module attributes {stable_mosaic.version = 11 : i64} {
  func.func @_fused_kernel(%arg0: i32, %arg1: i32, %arg2: memref<10x128xf32, #tpu.memory_space<vmem>>, %arg3: memref<128x128xf32, #tpu.memory_space<vmem>>, %arg4: memref<10x128xf32, #tpu.memory_space<vmem>>) attributes {dimension_semantics = [#tpu.dimension_semantics<parallel>, #tpu.dimension_semantics<parallel>], iteration_bounds = array<i64: 1, 1>, scalar_prefetch = 0 : i64, scratch_operands = 0 : i64, tpu.core_type = #tpu.core_type<tc>, window_params = [{transform_indices = @transform_0, window_bounds = array<i64: 10, 128>}, {transform_indices = @transform_1, window_bounds = array<i64: 128, 128>}, {transform_indices = @transform_2, window_bounds = array<i64: 10, 128>}]} {
    %c0 = arith.constant 0 : index
    %c0_0 = arith.constant 0 : index
    %0 = vector.load %arg2[%c0, %c0_0] : memref<10x128xf32, #tpu.memory_space<vmem>>, vector<10x128xf32>
    %c0_1 = arith.constant 0 : index
    %c0_2 = arith.constant 0 : index
    %1 = vector.load %arg3[%c0_1, %c0_2] : memref<128x128xf32, #tpu.memory_space<vmem>>, vector<128x128xf32>
    %cst = arith.constant dense<0.000000e+00> : vector<10x128xf32>
    %2 = tpu.matmul %0, %1, %cst {dimension_numbers = #tpu.dot_dimension_numbers<[1], [0], [0], [1], [0, 0, 1, 1], [], []>} : vector<10x128xf32>, vector<128x128xf32>, vector<10x128xf32> -> vector<10x128xf32>
    %c0_3 = arith.constant 0 : index
    %c0_4 = arith.constant 0 : index
    %3 = vector.load %arg4[%c0_3, %c0_4] : memref<10x128xf32, #tpu.memory_space<vmem>>, vector<10x128xf32>
    tpu.vector_store %arg4[%c0_3, %c0_4], %2 {strides = array<i32>} : memref<10x128xf32, #tpu.memory_space<vmem>>, vector<10x128xf32>,
    return
  }
  func.func @transform_0(%arg0: i32, %arg1: i32) -> (i32, i32) {
    %c0_i32 = arith.constant 0 : i32
    %c0_i32_0 = arith.constant 0 : i32
    return %arg0, %c0_i32 : i32, i32
  }
  func.func @transform_1(%arg0: i32, %arg1: i32) -> (i32, i32) {
    %c0_i32 = arith.constant 0 : i32
    %c0_i32_0 = arith.constant 0 : i32
    return %c0_i32, %arg1 : i32, i32
  }
  func.func @transform_2(%arg0: i32, %arg1: i32) -> (i32, i32) {
    %c0_i32 = arith.constant 0 : i32
    return %arg0, %arg1 : i32, i32
  }
}

</mosaic_0001>

<llo_original>
// kernel: sepnet_linear_vit.1
$region0: #{sepnet_linear_vit.1}
  #allocation0 [shape = 'u32[]', space=smem, size = 0x4, offset = 0x4, fixed_abs, tag = 'smem constant byte address 0x4 - core index']
  #allocation1 [shape = 'u32[144,128]{1,0:T(1,128)}', space=vmem, size = 0x12000, scoped, tag = 'internal scratch']
  %s0 = inlined_call_operand.vmem [shape: f32[10,128], index: 0, kind: input, shape index: {}]
  %s1 = inlined_call_operand.vmem [shape: f32[128,128], index: 1, kind: input, shape index: {}]
  %s2 = inlined_call_operand.vmem [shape: f32[10,128], index: 2, kind: output, shape index: {}]
  %s3 = sld [smem:[#allocation0]]
  $region18: #{sepnet_linear_vit.1} parent=0
    _
  %s5 = ssub.s32 1, %s3
  %s6 = scalar_select 0, %s5, %s3
  // Predicated region
  $region2: #{sepnet_linear_vit.1} parent=0 // pred_check
    _
  $region3: #{sepnet_linear_vit.1} parent=0 // pred_check_branch
    %8 = sbr.rel (0) target = $region5
  $region4: #{sepnet_linear_vit.1} parent=0 // pred_region
    _
  $region5: #{sepnet_linear_vit.1} parent=0 // pred_fallthru
    _
  // Predicated region
  $region6: #{sepnet_linear_vit.1} parent=0 // pred_check
    _
  $region7: #{sepnet_linear_vit.1} parent=0 // pred_check_branch
    %10 = sbr.rel (0) target = $region9
  $region8: #{sepnet_linear_vit.1} parent=0 // pred_region
    _
  $region9: #{sepnet_linear_vit.1} parent=0 // pred_fallthru
    _
  %v11 = vld [vmem:[%s0] sm:$0xff]
  %v12 = vld [vmem:[%s0 + $0x8] sm:$0x3]
  %v13 = vld [vmem:[%s1] sm:$0xff]
  %v14 = vld [vmem:[%s1 + $0x8] sm:$0xff]
  %v15 = vld [vmem:[%s1 + $0x10] sm:$0xff]
  %v16 = vld [vmem:[%s1 + $0x18] sm:$0xff]
  %v17 = vld [vmem:[%s1 + $0x20] sm:$0xff]
  %v18 = vld [vmem:[%s1 + $0x28] sm:$0xff]
  %v19 = vld [vmem:[%s1 + $0x30] sm:$0xff]
  %v20 = vld [vmem:[%s1 + $0x38] sm:$0xff]
  %v21 = vld [vmem:[%s1 + $0x40] sm:$0xff]
  %v22 = vld [vmem:[%s1 + $0x48] sm:$0xff]
  %v23 = vld [vmem:[%s1 + $0x50] sm:$0xff]
  %v24 = vld [vmem:[%s1 + $0x58] sm:$0xff]
  %v25 = vld [vmem:[%s1 + $0x60] sm:$0xff]
  %v26 = vld [vmem:[%s1 + $0x68] sm:$0xff]
  %v27 = vld [vmem:[%s1 + $0x70] sm:$0xff]
  %v28 = vld [vmem:[%s1 + $0x78] sm:$0xff]
  %29 = vmatprep.subr.mxu0 0.0
  %30 = vmatpush1.msra.mxu0 %v13
  %31 = vmatprep.subr.mxu0 0.0
  %32 = vmatpush1.msra.mxu0 %v14
  %33 = vmatprep.subr.mxu0 0.0
  %34 = vmatpush1.msra.mxu0 %v15
  %35 = vmatprep.subr.mxu0 0.0
  %36 = vmatpush1.msra.mxu0 %v16
  %37 = vmatprep.subr.mxu0 0.0
  %38 = vmatpush1.msra.mxu0 %v17
  %39 = vmatprep.subr.mxu0 0.0
  %40 = vmatpush1.msra.mxu0 %v18
  %41 = vmatprep.subr.mxu0 0.0
  %42 = vmatpush1.msra.mxu0 %v19
  %43 = vmatprep.subr.mxu0 0.0
  %44 = vmatpush1.msra.mxu0 %v20
  %45 = vmatprep.subr.mxu0 0.0
  %46 = vmatpush1.msra.mxu0 %v21
  %47 = vmatprep.subr.mxu0 0.0
  %48 = vmatpush1.msra.mxu0 %v22
  %49 = vmatprep.subr.mxu0 0.0
  %50 = vmatpush1.msra.mxu0 %v23
  %51 = vmatprep.subr.mxu0 0.0
  %52 = vmatpush1.msra.mxu0 %v24
  %53 = vmatprep.subr.mxu0 0.0
  %54 = vmatpush1.msra.mxu0 %v25
  %55 = vmatprep.subr.mxu0 0.0
  %56 = vmatpush1.msra.mxu0 %v26
  %57 = vmatprep.subr.mxu0 0.0
  %58 = vmatpush1.msra.mxu0 %v27
  %59 = vmatprep.subr.mxu0 0.0
  %60 = vmatpush1.msra.mxu0 %v28
  %61 = vmatprep.subr.mxu0 0.0
  %62 = vmatpush1.msra.mxu0 0.0
  %63 = vmatprep.subr.mxu0 0.0
  %64 = vmatpush1.msra.mxu0 0.0
  %65 = vmatprep.subr.mxu0 0.0
  %66 = vmatpush1.msra.mxu0 0.0
  %67 = vmatprep.subr.mxu0 0.0
  %68 = vmatpush1.msra.mxu0 0.0
  %69 = vmatprep.subr.mxu0 0.0
  %70 = vmatpush1.msra.mxu0 0.0
  %71 = vmatprep.subr.mxu0 0.0
  %72 = vmatpush1.msra.mxu0 0.0
  %73 = vmatprep.subr.mxu0 0.0
  %74 = vmatpush1.msra.mxu0 0.0
  %75 = vmatprep.subr.mxu0 0.0
  %76 = vmatpush1.msra.mxu0 0.0
  %77 = vmatprep.subr.mxu0 0.0
  %78 = vmatpush1.msra.mxu0 0.0
  %79 = vmatprep.subr.mxu0 0.0
  %80 = vmatpush1.msra.mxu0 0.0
  %81 = vmatprep.subr.mxu0 0.0
  %82 = vmatpush1.msra.mxu0 0.0
  %83 = vmatprep.subr.mxu0 0.0
  %84 = vmatpush1.msra.mxu0 0.0
  %85 = vmatprep.subr.mxu0 0.0
  %86 = vmatpush1.msra.mxu0 0.0
  %87 = vmatprep.subr.mxu0 0.0
  %88 = vmatpush1.msra.mxu0 0.0
  %89 = vmatprep.subr.mxu0 0.0
  %90 = vmatpush1.msra.mxu0 0.0
  %91 = vmatprep.subr.mxu0 0.0
  %92 = vmatpush1.msra.mxu0 0.0
  %93 = vmatprep.mubr.f32.mxu0 0.0
  %94 = vmatmul.mubr.f32.gmra.mrb[0].mxu0 %v11
  %v95 = vpop.f32.mrb[0].mxu0
  %v96 = vadd.f32 0.0, %v95
  %v97 = vpop.f32.mrb[0].mxu0
  %98 = vmatprep.mubr.f32.mxu0 0.0
  %99 = vmatmul.mubr.f32.gmra.mrb[0].mxu0 %v12
  %v100 = vpop.f32.mrb[0].mxu0
  %v101 = vadd.f32 0.0, %v100
  %v102 = vpop.f32.mrb[0].mxu0
  %103 = vdwg.mxu0
  %104 = vst [vmem:[%s2] sm:$0xff] %v96
  %105 = vst [vmem:[%s2 + $0x8] sm:$0x3] %v101
  // Predicated region
  $region10: #{sepnet_linear_vit.1} parent=0 // pred_check
    _
  $region11: #{sepnet_linear_vit.1} parent=0 // pred_check_branch
    %107 = sbr.rel (0) target = $region13
  $region12: #{sepnet_linear_vit.1} parent=0 // pred_region
    _
  $region13: #{sepnet_linear_vit.1} parent=0 // pred_fallthru
    _
  // Predicated region
  $region14: #{sepnet_linear_vit.1} parent=0 // pred_check
    _
  $region15: #{sepnet_linear_vit.1} parent=0 // pred_check_branch
    %109 = sbr.rel (0) target = $region17
  $region16: #{sepnet_linear_vit.1} parent=0 // pred_region
    _
  $region17: #{sepnet_linear_vit.1} parent=0 // pred_fallthru
    _

</llo_original>
